<compile_context>
chip_gen: v5e
topology: v5e:2x2
jax: 0.10.0
libtpu: 0.0.40
codegen_flags: <defaults>
</compile_context>

<pallas_src>
import functools
import math

import jax
import jax.numpy as jnp
from jax.experimental import pallas as pl
from jax.experimental.pallas import tpu as pltpu


def _round_up(x: int, m: int) -> int:
    return ((x + m - 1) // m) * m


def _cdiv(a: int, b: int) -> int:
    return (a + b - 1) // b


def _vmem_limit_bytes() -> int:
    """Generation-aware scoped-VMEM limit (~75% of physical)."""
    phys = 64 * 1024 * 1024  # conservative default = v7x physical per TC
    try:
        info = pltpu.get_tpu_info()
        phys = int(getattr(info, "vmem_capacity_bytes", phys))
    except Exception:
        pass
    return (phys * 3) // 4   # 64 MiB -> 48 MiB (v7x); 128 MiB -> 96 MiB (v5e/v6e)


# ---------------------------------------------------------------------------
# Fused kernel: refs = (x, w0, b0, w1, b1, ..., out)
# ---------------------------------------------------------------------------
def _fc_body_kernel(x_ref, *refs):
    o_ref = refs[-1]
    wb = refs[:-1]
    n_layers = len(wb) // 2

    h = x_ref[...]                      # (tb, d0_p) bf16 activations for the MXU
    y = None
    for l in range(n_layers):           # static unroll (layer count is static)
        w = wb[2 * l][...]              # (din_p, dout_p) bf16, VMEM-resident
        b = wb[2 * l + 1][...]          # (1, dout_p)     f32
        y = jnp.dot(h, w, preferred_element_type=jnp.float32)   # f32 accumulate
        y = jnp.maximum(y + b, 0.0)                             # bias + ReLU (f32)
        if l + 1 < n_layers:
            h = y.astype(jnp.bfloat16)  # feed next matmul at full MXU rate
    o_ref[...] = y.astype(o_ref.dtype)


# ---------------------------------------------------------------------------
# Parameter init (matches nn.init.xavier_uniform_ + zero bias)
# ---------------------------------------------------------------------------
def init_fc_body(key, input_dim, hidden_units, dtype=jnp.float32):
    dims = (input_dim,) + tuple(hidden_units)
    params = []
    for dim_in, dim_out in zip(dims[:-1], dims[1:]):
        key, sub = jax.random.split(key)
        limit = math.sqrt(6.0 / (dim_in + dim_out))
        w = jax.random.uniform(sub, (dim_in, dim_out), dtype, -limit, limit)
        b = jnp.zeros((dim_out,), dtype)
        params.append((w, b))
    return params


def prepare_fc_body(params):
    """Pad every layer to 128-multiples and cast weights to bf16 (done once)."""
    prepped = []
    for w, b in params:
        din, dout = w.shape
        din_p, dout_p = _round_up(din, 128), _round_up(dout, 128)
        w_p = jnp.zeros((din_p, dout_p), jnp.bfloat16)
        w_p = w_p.at[:din, :dout].set(w.astype(jnp.bfloat16))
        b_p = jnp.zeros((1, dout_p), jnp.float32)
        b_p = b_p.at[:, :dout].set(b.astype(jnp.float32)[None, :])
        prepped.append((w_p, b_p))
    out_dim = params[-1][0].shape[1]
    return prepped, out_dim


# ---------------------------------------------------------------------------
# Fused forward pass (call under jit so pad / pallas_call / slice fuse)
# ---------------------------------------------------------------------------
def fc_body_forward(prepped, out_dim, x, *, batch_tile=512, out_dtype=None):
    B, d_in = x.shape
    out_dtype = x.dtype if out_dtype is None else out_dtype
    out_bytes = jnp.dtype(out_dtype).itemsize
    d0_p = prepped[0][0].shape[0]       # padded input dim
    dL_p = prepped[-1][0].shape[1]      # padded output dim

    # ---- tile geometry: 16-row alignment (bf16 sublanes), cdiv-balanced tiles
    b16 = _round_up(B, 16)
    n_tiles = max(1, _cdiv(b16, batch_tile))
    if n_tiles > 1 and n_tiles % 2 == 1:
        n_tiles += 1                    # v7x: even tile count over 2 TCs
    tb = _round_up(_cdiv(b16, n_tiles), 16)

    # ---- VMEM budget guard: weights resident at Buffered(1), x/out double-buffered
    vmem_budget = _vmem_limit_bytes()
    w_bytes = sum(w.size * w.dtype.itemsize + bv.size * bv.dtype.itemsize
                  for w, bv in prepped)
    max_hidden_p = max(max(w.shape[1] for w, _ in prepped), d0_p)

    def _per_tile_bytes(tb_):
        io = 2 * tb_ * d0_p * 2 + 2 * tb_ * dL_p * out_bytes   # x in + out (2-buf)
        scratch = tb_ * max_hidden_p * (4 + 2)                  # f32 acc + bf16 recast
        return io + scratch

    while w_bytes + _per_tile_bytes(tb) > vmem_budget and tb > 16:
        tb = _round_up(tb // 2, 16)
    if w_bytes + _per_tile_bytes(tb) > vmem_budget:
        # TODO(synk): fall back to tiling the output-feature / contraction dims
        # (second grid axis or pltpu.emit_pipeline over K) for weight stacks that
        # exceed physical VMEM (e.g. several 4096x4096 bf16 layers on v7x).
        raise ValueError(
            f"FCBody padded weight stack ({w_bytes} B) does not fit in the "
            f"VMEM budget ({vmem_budget} B); add an N/K-tiled fallback.")

    n_tiles = _cdiv(b16, tb)
    if n_tiles > 1 and n_tiles % 2 == 1:
        n_tiles += 1
    b_p = n_tiles * tb

    # ---- pad/cast input (fuses into the surrounding jit; padded rows/cols
    #      are zeros -> padded feature columns stay exactly zero layer-to-layer)
    x_p = jnp.zeros((b_p, d0_p), jnp.bfloat16)
    x_p = x_p.at[:B, :d_in].set(x.astype(jnp.bfloat16))

    in_specs = [pl.BlockSpec((tb, d0_p), lambda i: (i, 0))]
    args = [x_p]
    for w_p, b_row in prepped:
        # Constant index_map -> single-buffered resident params (no dup in VMEM).
        in_specs.append(pl.BlockSpec(w_p.shape, lambda i: (0, 0),
                                     pipeline_mode=pl.Buffered(1)))
        in_specs.append(pl.BlockSpec(b_row.shape, lambda i: (0, 0),
                                     pipeline_mode=pl.Buffered(1)))
        args.append(w_p)
        args.append(b_row)

    flops = 2 * b_p * sum(w.shape[0] * w.shape[1] for w, _ in prepped)
    bytes_accessed = (x_p.size * x_p.dtype.itemsize + w_bytes
                      + b_p * dL_p * out_bytes)
    cost = pl.CostEstimate(flops=flops, transcendentals=0,
                           bytes_accessed=bytes_accessed)

    out_p = pl.pallas_call(
        _fc_body_kernel,
        out_shape=jax.ShapeDtypeStruct((b_p, dL_p), out_dtype),
        grid_spec=pltpu.PrefetchScalarGridSpec(
            num_scalar_prefetch=0,
            grid=(n_tiles,),
            in_specs=in_specs,
            out_specs=pl.BlockSpec((tb, dL_p), lambda i: (i, 0)),
        ),
        compiler_params=pltpu.CompilerParams(
            dimension_semantics=("parallel",),   # shard batch tiles across TCs
            vmem_limit_bytes=vmem_budget,
        ),
        cost_estimate=cost,
    )(*args)

    return out_p[:B, :out_dim]


def make_fc_body_forward(prepped, out_dim, *, batch_tile=512, out_dtype=None):
    """Returns a jitted forward(x) closing over the prepared parameters."""
    return jax.jit(functools.partial(fc_body_forward, prepped, out_dim,
                                     batch_tile=batch_tile, out_dtype=out_dtype))


if __name__ == "__main__":
    key = jax.random.PRNGKey(0)
    k_param, k_input = jax.random.split(key)

    batch = 8
    input_dim = 32
    hidden_units = (64, 32)

    params = init_fc_body(k_param, input_dim, hidden_units)
    prepped, out_dim = prepare_fc_body(params)

    x = jax.random.normal(k_input, (batch, input_dim), jnp.float32)

    fwd = make_fc_body_forward(prepped, out_dim)
    out = fwd(x)
    jax.block_until_ready(out)
    assert out.shape == (batch, hidden_units[-1])

    # Reference that mirrors the kernel's numerics (bf16 matmul, f32 accumulate).
    ref = x
    for w, b in params:
        ref = jnp.maximum(
            jnp.dot(ref.astype(jnp.bfloat16), w.astype(jnp.bfloat16),
                    preferred_element_type=jnp.float32) + b, 0.0)
    assert jnp.allclose(out, ref, atol=1e-2, rtol=1e-2)

    # Looser check against the pure-f32 PyTorch-equivalent forward.
    # NOTE: inter-layer bf16 recast means deeper/wider stacks need looser tols.
    ref32 = x
    for w, b in params:
        ref32 = jnp.maximum(ref32 @ w + b, 0.0)
    assert jnp.allclose(out, ref32, atol=5e-2, rtol=5e-2)

    print("KERNEL_OK")
</pallas_src>

<mosaic_0001>
module attributes {stable_mosaic.version = 11 : i64} {
  func.func @_fc_body_kernel(%arg0: i32, %arg1: memref<16x128xbf16, #tpu.memory_space<vmem>>, %arg2: memref<128x128xbf16, #tpu.memory_space<vmem>>, %arg3: memref<1x128xf32, #tpu.memory_space<vmem>>, %arg4: memref<128x128xbf16, #tpu.memory_space<vmem>>, %arg5: memref<1x128xf32, #tpu.memory_space<vmem>>, %arg6: memref<16x128xf32, #tpu.memory_space<vmem>>) attributes {dimension_semantics = [#tpu.dimension_semantics<parallel>], iteration_bounds = array<i64: 1>, scalar_prefetch = 0 : i64, scratch_operands = 0 : i64, tpu.core_type = #tpu.core_type<tc>, window_params = [{transform_indices = @transform_0, window_bounds = array<i64: 16, 128>}, {pipeline_mode = #tpu.pipeline_mode<synchronous>, transform_indices = @transform_1, window_bounds = array<i64: 128, 128>}, {pipeline_mode = #tpu.pipeline_mode<synchronous>, transform_indices = @transform_2, window_bounds = array<i64: 1, 128>}, {pipeline_mode = #tpu.pipeline_mode<synchronous>, transform_indices = @transform_3, window_bounds = array<i64: 128, 128>}, {pipeline_mode = #tpu.pipeline_mode<synchronous>, transform_indices = @transform_4, window_bounds = array<i64: 1, 128>}, {transform_indices = @transform_5, window_bounds = array<i64: 16, 128>}]} {
    %c0 = arith.constant 0 : index
    %c0_0 = arith.constant 0 : index
    %0 = vector.load %arg1[%c0, %c0_0] : memref<16x128xbf16, #tpu.memory_space<vmem>>, vector<16x128xbf16>
    %c0_1 = arith.constant 0 : index
    %c0_2 = arith.constant 0 : index
    %1 = vector.load %arg2[%c0_1, %c0_2] : memref<128x128xbf16, #tpu.memory_space<vmem>>, vector<128x128xbf16>
    %c0_3 = arith.constant 0 : index
    %c0_4 = arith.constant 0 : index
    %2 = vector.load %arg3[%c0_3, %c0_4] : memref<1x128xf32, #tpu.memory_space<vmem>>, vector<1x128xf32>
    %cst = arith.constant dense<0.000000e+00> : vector<16x128xf32>
    %3 = tpu.matmul %0, %1, %cst {dimension_numbers = #tpu.dot_dimension_numbers<[1], [0], [0], [1], [0, 0, 1, 1], [], []>} : vector<16x128xbf16>, vector<128x128xbf16>, vector<16x128xf32> -> vector<16x128xf32>
    %4 = vector.broadcast %2 : vector<1x128xf32> to vector<16x128xf32>
    %5 = arith.addf %3, %4 : vector<16x128xf32>
    %cst_5 = arith.constant 0.000000e+00 : f32
    %6 = vector.broadcast %cst_5 : f32 to vector<16x128xf32>
    %7 = arith.maximumf %5, %6 : vector<16x128xf32>
    %8 = arith.truncf %7 : vector<16x128xf32> to vector<16x128xbf16>
    %c0_6 = arith.constant 0 : index
    %c0_7 = arith.constant 0 : index
    %9 = vector.load %arg4[%c0_6, %c0_7] : memref<128x128xbf16, #tpu.memory_space<vmem>>, vector<128x128xbf16>
    %c0_8 = arith.constant 0 : index
    %c0_9 = arith.constant 0 : index
    %10 = vector.load %arg5[%c0_8, %c0_9] : memref<1x128xf32, #tpu.memory_space<vmem>>, vector<1x128xf32>
    %cst_10 = arith.constant dense<0.000000e+00> : vector<16x128xf32>
    %11 = tpu.matmul %8, %9, %cst_10 {dimension_numbers = #tpu.dot_dimension_numbers<[1], [0], [0], [1], [0, 0, 1, 1], [], []>} : vector<16x128xbf16>, vector<128x128xbf16>, vector<16x128xf32> -> vector<16x128xf32>
    %12 = vector.broadcast %10 : vector<1x128xf32> to vector<16x128xf32>
    %13 = arith.addf %11, %12 : vector<16x128xf32>
    %cst_11 = arith.constant 0.000000e+00 : f32
    %14 = vector.broadcast %cst_11 : f32 to vector<16x128xf32>
    %15 = arith.maximumf %13, %14 : vector<16x128xf32>
    %c0_12 = arith.constant 0 : index
    %c0_13 = arith.constant 0 : index
    %16 = vector.load %arg6[%c0_12, %c0_13] : memref<16x128xf32, #tpu.memory_space<vmem>>, vector<16x128xf32>
    tpu.vector_store %arg6[%c0_12, %c0_13], %15 {strides = array<i32>} : memref<16x128xf32, #tpu.memory_space<vmem>>, vector<16x128xf32>,
    return
  }
  func.func @transform_0(%arg0: i32) -> (i32, i32) {
    %c0_i32 = arith.constant 0 : i32
    %c0_i32_0 = arith.constant 0 : i32
    return %arg0, %c0_i32 : i32, i32
  }
  func.func @transform_1(%arg0: i32) -> (i32, i32) {
    %c0_i32 = arith.constant 0 : i32
    %c0_i32_0 = arith.constant 0 : i32
    %c0_i32_1 = arith.constant 0 : i32
    return %c0_i32, %c0_i32_0 : i32, i32
  }
  func.func @transform_2(%arg0: i32) -> (i32, i32) {
    %c0_i32 = arith.constant 0 : i32
    %c0_i32_0 = arith.constant 0 : i32
    %c0_i32_1 = arith.constant 0 : i32
    return %c0_i32, %c0_i32_0 : i32, i32
  }
  func.func @transform_3(%arg0: i32) -> (i32, i32) {
    %c0_i32 = arith.constant 0 : i32
    %c0_i32_0 = arith.constant 0 : i32
    %c0_i32_1 = arith.constant 0 : i32
    return %c0_i32, %c0_i32_0 : i32, i32
  }
  func.func @transform_4(%arg0: i32) -> (i32, i32) {
    %c0_i32 = arith.constant 0 : i32
    %c0_i32_0 = arith.constant 0 : i32
    %c0_i32_1 = arith.constant 0 : i32
    return %c0_i32, %c0_i32_0 : i32, i32
  }
  func.func @transform_5(%arg0: i32) -> (i32, i32) {
    %c0_i32 = arith.constant 0 : i32
    %c0_i32_0 = arith.constant 0 : i32
    return %arg0, %c0_i32 : i32, i32
  }
}

</mosaic_0001>

<llo_original>
// kernel: fc_body_forward.1
$region0: #{fc_body_forward.1}
  #allocation0 [shape = 'u32[]', space=smem, size = 0x4, offset = 0x4, fixed_abs, tag = 'smem constant byte address 0x4 - core index']
  #allocation1 [shape = 'u32[72,128]{1,0:T(1,128)}', space=vmem, size = 0x9000, scoped, tag = 'internal scratch']
  %s0 = inlined_call_operand.vmem [shape: bf16[16,128], index: 0, kind: input, shape index: {}]
  %s1 = inlined_call_operand.hbm [shape: bf16[128,128], index: 1, kind: input, shape index: {}]
  %s2 = inlined_call_operand.vmem [shape: f32[1,128], index: 2, kind: input, shape index: {}, may-alias: {2,4}]
  %s3 = inlined_call_operand.hbm [shape: bf16[128,128], index: 3, kind: input, shape index: {}]
  %s4 = inlined_call_operand.vmem [shape: f32[1,128], index: 4, kind: input, shape index: {}, may-alias: {2,4}]
  %s5 = inlined_call_operand.vmem [shape: f32[16,128], index: 5, kind: output, shape index: {}]
  %s6 = sld [smem:[#allocation0]]
  $region38: #{fc_body_forward.1} parent=0
    _
  %s8 = ssub.s32 1, %s6
  %s9 = scalar_select 0, %s8, %s6
  $region1: #{fc_body_forward.1} parent=0
    #allocation2 [shape = 'u8[32768]{0}', space=vmem, size = 0x8000, scoped, tag = 'input window, operand 1, single buffered']
    #allocation3 [shape = 's32[1]{0}', space=sflag, size = 0x4, scoped, tag = 'scoped memory for fc_body_forward.1']
    #allocation4 [shape = 'u8[32768]{0}', space=vmem, size = 0x8000, scoped, tag = 'input window, operand 3, single buffered']
    #allocation5 [shape = 's32[1]{0}', space=sflag, size = 0x4, scoped, tag = 'scoped memory for fc_body_forward.1']
    %10 = vsyncpa [#allocation3], 0
    %11 = vsyncpa [#allocation5], 0
    // Predicated region
    $region2: #{fc_body_forward.1} parent=1 // pred_check
      _
    $region3: #{fc_body_forward.1} parent=1 // pred_check_branch
      %13 = sbr.rel (0) target = $region5
    $region4: #{fc_body_forward.1} parent=1 // pred_region
      _
    $region5: #{fc_body_forward.1} parent=1 // pred_fallthru
      _
    // Predicated region
    $region6: #{fc_body_forward.1} parent=1 // pred_check
      _
    $region7: #{fc_body_forward.1} parent=1 // pred_check_branch
      %15 = sbr.rel (0) target = $region9
    $region8: #{fc_body_forward.1} parent=1 // pred_region
      %17 = vsyncadd [#allocation3], 0
      %s18 = sshll.u32 %s1, 4
      %s19 = int_to_ptr.hbm [resolvable:$true] %s18
      %s20 = sshll.u32 [#allocation2], 4
      %s21 = int_to_ptr.vmem [resolvable:$true] %s20
      %26 = dma.hbm_to_vmem [thread:$0]  %s19, 1024, %s21, [#allocation3], 64, 64, 4
    $region9: #{fc_body_forward.1} parent=1 // pred_fallthru
      _
    // Predicated region
    $region10: #{fc_body_forward.1} parent=1 // pred_check
      _
    $region11: #{fc_body_forward.1} parent=1 // pred_check_branch
      %28 = sbr.rel (0) target = $region13
    $region12: #{fc_body_forward.1} parent=1 // pred_region
      _
    $region13: #{fc_body_forward.1} parent=1 // pred_fallthru
      _
    // Predicated region
    $region14: #{fc_body_forward.1} parent=1 // pred_check
      _
    $region15: #{fc_body_forward.1} parent=1 // pred_check_branch
      %30 = sbr.rel (0) target = $region17
    $region16: #{fc_body_forward.1} parent=1 // pred_region
      %32 = vsyncadd [#allocation5], 0
      %s33 = sshll.u32 %s3, 4
      %s34 = int_to_ptr.hbm [resolvable:$true] %s33
      %s35 = sshll.u32 [#allocation4], 4
      %s36 = int_to_ptr.vmem [resolvable:$true] %s35
      %41 = dma.hbm_to_vmem [thread:$0]  %s34, 1024, %s36, [#allocation5], 64, 64, 4
    $region17: #{fc_body_forward.1} parent=1 // pred_fallthru
      _
    // Predicated region
    $region18: #{fc_body_forward.1} parent=1 // pred_check
      _
    $region19: #{fc_body_forward.1} parent=1 // pred_check_branch
      %43 = sbr.rel (0) target = $region21
    $region20: #{fc_body_forward.1} parent=1 // pred_region
      _
    $region21: #{fc_body_forward.1} parent=1 // pred_fallthru
      _
    // Predicated region
    $region22: #{fc_body_forward.1} parent=1 // pred_check
      _
    $region23: #{fc_body_forward.1} parent=1 // pred_check_branch
      %45 = sbr.rel (0) target = $region25
    $region24: #{fc_body_forward.1} parent=1 // pred_region
      %47 = dma.done [#allocation3], 1024
    $region25: #{fc_body_forward.1} parent=1 // pred_fallthru
      _
    // Predicated region
    $region26: #{fc_body_forward.1} parent=1 // pred_check
      _
    $region27: #{fc_body_forward.1} parent=1 // pred_check_branch
      %49 = sbr.rel (0) target = $region29
    $region28: #{fc_body_forward.1} parent=1 // pred_region
      %51 = dma.done [#allocation5], 1024
    $region29: #{fc_body_forward.1} parent=1 // pred_fallthru
      _
    %v52 = vld [vmem:[%s0] sm:$0xf]
    %v53 = vld [vmem:[%s0 + $0x4] sm:$0xf]
    %v54 = vld [vmem:[#allocation2] sm:$0xf]
    %v55 = vld [vmem:[#allocation2 + $0x4] sm:$0xf]
    %v56 = vld [vmem:[#allocation2 + $0x8] sm:$0xf]
    %v57 = vld [vmem:[#allocation2 + $0xc] sm:$0xf]
    %v58 = vld [vmem:[#allocation2 + $0x10] sm:$0xf]
    %v59 = vld [vmem:[#allocation2 + $0x14] sm:$0xf]
    %v60 = vld [vmem:[#allocation2 + $0x18] sm:$0xf]
    %v61 = vld [vmem:[#allocation2 + $0x1c] sm:$0xf]
    %v62 = vld [vmem:[#allocation2 + $0x20] sm:$0xf]
    %v63 = vld [vmem:[#allocation2 + $0x24] sm:$0xf]
    %v64 = vld [vmem:[#allocation2 + $0x28] sm:$0xf]
    %v65 = vld [vmem:[#allocation2 + $0x2c] sm:$0xf]
    %v66 = vld [vmem:[#allocation2 + $0x30] sm:$0xf]
    %v67 = vld [vmem:[#allocation2 + $0x34] sm:$0xf]
    %v68 = vld [vmem:[#allocation2 + $0x38] sm:$0xf]
    %v69 = vld [vmem:[#allocation2 + $0x3c] sm:$0xf]
    %v70 = vld [vmem:[%s2] sm:$0x1]
    %v72 = vperm.slane %v70, 0
    %v76 = vunpack.c.l.b16 %v52
    %v77 = vunpack.c.l.b16 %v53
    %v78 = vpack.c.b16 %v77, %v76
    %v96 = vunpack.c.l.b16 %v54
    %v97 = vunpack.c.l.b16 %v55
    %v98 = vunpack.c.l.b16 %v56
    %v99 = vunpack.c.l.b16 %v57
    %v100 = vunpack.c.l.b16 %v58
    %v101 = vunpack.c.l.b16 %v59
    %v102 = vunpack.c.l.b16 %v60
    %v103 = vunpack.c.l.b16 %v61
    %v104 = vunpack.c.l.b16 %v62
    %v105 = vunpack.c.l.b16 %v63
    %v106 = vunpack.c.l.b16 %v64
    %v107 = vunpack.c.l.b16 %v65
    %v108 = vunpack.c.l.b16 %v66
    %v109 = vunpack.c.l.b16 %v67
    %v110 = vunpack.c.l.b16 %v68
    %v111 = vunpack.c.l.b16 %v69
    %v112 = vpack.c.b16 %v97, %v96
    %v113 = vpack.c.b16 %v99, %v98
    %v114 = vpack.c.b16 %v101, %v100
    %v115 = vpack.c.b16 %v103, %v102
    %v116 = vpack.c.b16 %v105, %v104
    %v117 = vpack.c.b16 %v107, %v106
    %v118 = vpack.c.b16 %v109, %v108
    %v119 = vpack.c.b16 %v111, %v110
    %128 = vmatpush.bf16.msra.mxu0 %v119
    %129 = vmatpush.bf16.msra.mxu0 %v118
    %130 = vmatpush.bf16.msra.mxu0 %v117
    %131 = vmatpush.bf16.msra.mxu0 %v116
    %132 = vmatpush.bf16.msra.mxu0 %v115
    %133 = vmatpush.bf16.msra.mxu0 %v114
    %134 = vmatpush.bf16.msra.mxu0 %v113
    %135 = vmatpush.bf16.msra.mxu0 %v112
    %136 = vmatmul.bf16.gmra.mxu0 %v78
    %v137 = vpop.f32.mrf.mxu0
    %v138 = vadd.f32 %v72, %v137
    %v139 = vpop.f32.mrf.mxu0
    %v140 = vadd.f32 %v72, %v139
    %141 = vdwg.mxu0
    %v142 = vmax.f32 %v138, 0.0
    %v143 = vmax.f32 %v140, 0.0
    %v144 = vpack.c.bf16 %v143, %v142
    %v145 = vld [vmem:[#allocation4] sm:$0xf]
    %v146 = vld [vmem:[#allocation4 + $0x4] sm:$0xf]
    %v147 = vld [vmem:[#allocation4 + $0x8] sm:$0xf]
    %v148 = vld [vmem:[#allocation4 + $0xc] sm:$0xf]
    %v149 = vld [vmem:[#allocation4 + $0x10] sm:$0xf]
    %v150 = vld [vmem:[#allocation4 + $0x14] sm:$0xf]
    %v151 = vld [vmem:[#allocation4 + $0x18] sm:$0xf]
    %v152 = vld [vmem:[#allocation4 + $0x1c] sm:$0xf]
    %v153 = vld [vmem:[#allocation4 + $0x20] sm:$0xf]
    %v154 = vld [vmem:[#allocation4 + $0x24] sm:$0xf]
    %v155 = vld [vmem:[#allocation4 + $0x28] sm:$0xf]
    %v156 = vld [vmem:[#allocation4 + $0x2c] sm:$0xf]
    %v157 = vld [vmem:[#allocation4 + $0x30] sm:$0xf]
    %v158 = vld [vmem:[#allocation4 + $0x34] sm:$0xf]
    %v159 = vld [vmem:[#allocation4 + $0x38] sm:$0xf]
    %v160 = vld [vmem:[#allocation4 + $0x3c] sm:$0xf]
    %v161 = vld [vmem:[%s4] sm:$0x1]
    %v163 = vperm.slane %v161, 0
    %v181 = vunpack.c.l.b16 %v145
    %v182 = vunpack.c.l.b16 %v146
    %v183 = vunpack.c.l.b16 %v147
    %v184 = vunpack.c.l.b16 %v148
    %v185 = vunpack.c.l.b16 %v149
    %v186 = vunpack.c.l.b16 %v150
    %v187 = vunpack.c.l.b16 %v151
    %v188 = vunpack.c.l.b16 %v152
    %v189 = vunpack.c.l.b16 %v153
    %v190 = vunpack.c.l.b16 %v154
    %v191 = vunpack.c.l.b16 %v155
    %v192 = vunpack.c.l.b16 %v156
    %v193 = vunpack.c.l.b16 %v157
    %v194 = vunpack.c.l.b16 %v158
    %v195 = vunpack.c.l.b16 %v159
    %v196 = vunpack.c.l.b16 %v160
    %v197 = vpack.c.b16 %v182, %v181
    %v198 = vpack.c.b16 %v184, %v183
    %v199 = vpack.c.b16 %v186, %v185
    %v200 = vpack.c.b16 %v188, %v187
    %v201 = vpack.c.b16 %v190, %v189
    %v202 = vpack.c.b16 %v192, %v191
    %v203 = vpack.c.b16 %v194, %v193
    %v204 = vpack.c.b16 %v196, %v195
    %213 = vmatpush.bf16.msra.mxu0 %v204
    %214 = vmatpush.bf16.msra.mxu0 %v203
    %215 = vmatpush.bf16.msra.mxu0 %v202
    %216 = vmatpush.bf16.msra.mxu0 %v201
    %217 = vmatpush.bf16.msra.mxu0 %v200
    %218 = vmatpush.bf16.msra.mxu0 %v199
    %219 = vmatpush.bf16.msra.mxu0 %v198
    %220 = vmatpush.bf16.msra.mxu0 %v197
    %221 = vmatmul.bf16.gmra.mxu0 %v144
    %v222 = vpop.f32.mrf.mxu0
    %v223 = vadd.f32 %v163, %v222
    %v224 = vpop.f32.mrf.mxu0
    %v225 = vadd.f32 %v163, %v224
    %226 = vdwg.mxu0
    %v227 = vmax.f32 %v223, 0.0
    %v228 = vmax.f32 %v225, 0.0
    %229 = vst [vmem:[%s5] sm:$0xff] %v227
    %230 = vst [vmem:[%s5 + $0x8] sm:$0xff] %v228
    // Predicated region
    $region30: #{fc_body_forward.1} parent=1 // pred_check
      _
    $region31: #{fc_body_forward.1} parent=1 // pred_check_branch
      %232 = sbr.rel (0) target = $region33
    $region32: #{fc_body_forward.1} parent=1 // pred_region
      _
    $region33: #{fc_body_forward.1} parent=1 // pred_fallthru
      _
    // Predicated region
    $region34: #{fc_body_forward.1} parent=1 // pred_check
      _
    $region35: #{fc_body_forward.1} parent=1 // pred_check_branch
      %234 = sbr.rel (0) target = $region37
    $region36: #{fc_body_forward.1} parent=1 // pred_region
      _
    $region37: #{fc_body_forward.1} parent=1 // pred_fallthru
      _
    %235 = vsyncpa [#allocation3], 1
    %236 = vsyncpa [#allocation5], 1

</llo_original>
